<compile_context>
chip_gen: v5e
topology: v5e:2x2
jax: 0.10.0
libtpu: 0.0.40
codegen_flags: <defaults>
</compile_context>

<pallas_src>
import functools

import jax
import jax.numpy as jnp
from jax.experimental import pallas as pl
from jax.experimental.pallas import tpu as pltpu


def _cdiv(a, b):
    return -(-a // b)


def _round_up(x, m):
    return _cdiv(x, m) * m


def _largest_divisor_tile(dim, target):
    """Largest t <= target with dim % t == 0 (prefers multiples of 128)."""
    t = min(target, dim)
    for cand in range(t - (t % 128), 0, -128):
        if cand > 0 and dim % cand == 0:
            return cand
    for cand in range(t, 0, -1):
        if dim % cand == 0:
            return cand
    return dim


@functools.lru_cache(maxsize=1)
def _tpu_config():
    """Returns (device_kind, physical VMEM bytes, is_v7x, is_v5e)."""
    try:
        kind = jax.devices()[0].device_kind.lower()
    except Exception:
        kind = ""
    is_v7 = "v7" in kind
    is_v5e = ("v5e" in kind) or ("v5 lite" in kind) or ("v5lite" in kind)
    try:
        vmem_cap = int(pltpu.get_tpu_info().vmem_capacity_bytes)
    except Exception:
        vmem_cap = (64 if is_v7 else 128) * 1024 * 1024
    return kind, vmem_cap, is_v7, is_v5e


def _vmem_footprint(tm, ti, H, xb, wb):
    return (tm * H * xb              # x tile            (single-buffered)
            + 2 * H * (2 * ti) * wb  # [gate|up] weights  (double-buffered)
            + 2 * ti * H * wb        # down_proj weights  (double-buffered)
            + tm * H * xb            # output tile        (single-buffered)
            + tm * H * 4)            # fp32 accumulator scratch


def _select_tiles(T, H, I, xb, wb, tm_hint, ti_hint):
    """Generation-aware (tm, ti, vmem_limit_bytes) selection."""
    _, vmem_cap, is_v7, is_v5e = _tpu_config()
    budget = int(vmem_cap * 0.80)

    def _fix_tm(tm):
        tm = min(tm, T)
        # v7x megacore: keep >= 2 token tiles so both TensorCores get work.
        if is_v7 and T >= 256 and _cdiv(T, tm) < 2:
            tm = min(T, _round_up(_cdiv(T, 2), 128))
        return tm

    if tm_hint is not None or ti_hint is not None:
        tm = _fix_tm(tm_hint if tm_hint is not None else 256)
        ti = _largest_divisor_tile(I, ti_hint if ti_hint is not None else 512)
    else:
        if is_v7:      # 64 MiB VMEM, ridge ~311 FLOP/byte
            cands = [(512, 256), (384, 256), (256, 256), (256, 128), (128, 128)]
        elif is_v5e:   # ridge ~240 FLOP/byte: tm=256 already compute-bound
            cands = [(256, 512), (256, 256), (256, 128), (128, 128)]
        else:          # v6e / default: raise tm to clear ~655 FLOP/byte ridge
            cands = [(1024, 512), (768, 512), (512, 512), (512, 256),
                     (384, 256), (256, 256), (256, 128), (128, 128)]
        tm, ti = 128, 128
        for tm_c, ti_c in cands:
            tm, ti = _fix_tm(tm_c), _largest_divisor_tile(I, ti_c)
            if _vmem_footprint(tm, ti, H, xb, wb) <= budget:
                break

    est = _vmem_footprint(tm, ti, H, xb, wb)
    vmem_limit = max(32 * 1024 * 1024, int(est * 1.25))
    vmem_limit = min(vmem_limit, int(vmem_cap * 0.92))
    return tm, ti, vmem_limit


def _mlp_kernel(x_ref, wgu_ref, wd_ref, o_ref, acc_ref, *, ti):
    # x_ref  : (tm, H)     token tile (constant across j -> single-buffered)
    # wgu_ref: (H, 2*ti)   packed [gate | up] weight tile
    # wd_ref : (ti, H)     down_proj weight tile
    # o_ref  : (tm, H)     output tile (resident across j)
    # acc_ref: (tm, H)     fp32 down_proj accumulator
    j = pl.program_id(1)

    @pl.when(j == 0)
    def _init():
        acc_ref[...] = jnp.zeros_like(acc_ref)

    x = x_ref[...]
    # One MXU push covers both gate_proj and up_proj for this ti slice.
    gu = jnp.dot(x, wgu_ref[...], preferred_element_type=jnp.float32)
    gate = gu[:, :ti]
    up = gu[:, ti:]
    # SiLU epilogue in fp32; sigmoid runs on the EUP slot (free under MXU).
    hidden = (gate * jax.nn.sigmoid(gate)) * up
    # Cast to the weight dtype (bf16 in production) before the down MXU.
    acc_ref[...] += jnp.dot(hidden.astype(wd_ref.dtype), wd_ref[...],
                            preferred_element_type=jnp.float32)

    @pl.when(j == pl.num_programs(1) - 1)
    def _finalize():
        o_ref[...] = acc_ref[...].astype(o_ref.dtype)


@functools.partial(jax.jit,
                   static_argnames=("tm", "ti", "vmem_limit", "single_buffer"))
def _mlp_pallas(x2d, w_gu, down_w, *, tm, ti, vmem_limit, single_buffer):
    T, H = x2d.shape
    I = down_w.shape[0]
    grid = (_cdiv(T, tm), I // ti)

    xb = jnp.dtype(x2d.dtype).itemsize
    wb = jnp.dtype(w_gu.dtype).itemsize
    cost = pl.CostEstimate(
        flops=6 * T * H * I,
        transcendentals=T * I,
        bytes_accessed=2 * T * H * xb + grid[0] * 3 * H * I * wb)

    # x / output blocks only change when i advances -> a second buffer is dead
    # VMEM; single-buffer them to fund larger tm/ti.
    resident = dict(pipeline_mode=pl.Buffered(1)) if single_buffer else {}

    return pl.pallas_call(
        functools.partial(_mlp_kernel, ti=ti),
        out_shape=jax.ShapeDtypeStruct((T, H), x2d.dtype),
        grid_spec=pltpu.PrefetchScalarGridSpec(
            num_scalar_prefetch=0,
            grid=grid,
            in_specs=[
                pl.BlockSpec((tm, H), lambda i, j: (i, 0), **resident),
                pl.BlockSpec((H, 2 * ti), lambda i, j: (0, j)),
                pl.BlockSpec((ti, H), lambda i, j: (j, 0)),
            ],
            out_specs=pl.BlockSpec((tm, H), lambda i, j: (i, 0), **resident),
            scratch_shapes=[pltpu.VMEM((tm, H), jnp.float32)],
        ),
        compiler_params=pltpu.CompilerParams(
            dimension_semantics=("parallel", "arbitrary"),
            vmem_limit_bytes=vmem_limit),
        cost_estimate=cost,
    )(x2d, w_gu, down_w)


def deepseek_v3_mlp(x, gate_w, up_w, down_w, *, tm=None, ti=None):
    """DeepseekV3 MLP forward: down_proj( silu(x@gate_w) * (x@up_w) ).

    x: [B, S, H]; gate_w/up_w: [H, I]; down_w: [I, H]  ->  [B, S, H].
    Weights are stored [in, out] (transpose of nn.Linear.weight).
    tm/ti override the per-generation tile auto-selection; ti is snapped to a
    divisor of I so the reduction never reads a padded tail tile.
    """
    B, S, H = x.shape
    I = gate_w.shape[1]
    T = B * S
    x2d = x.reshape(T, H)

    xb = jnp.dtype(x.dtype).itemsize
    wb = jnp.dtype(gate_w.dtype).itemsize
    tm, ti, vmem_limit = _select_tiles(T, H, I, xb, wb, tm, ti)

    # Pack gate/up so each (H, 2*ti) column tile holds the matching ti columns
    # of both projections.  In production this is a one-time weight prep step.
    nI = I // ti
    w_gu = jnp.concatenate(
        [gate_w.reshape(H, nI, ti), up_w.reshape(H, nI, ti)], axis=2
    ).reshape(H, 2 * I)

    try:
        out2d = _mlp_pallas(x2d, w_gu, down_w, tm=tm, ti=ti,
                            vmem_limit=vmem_limit, single_buffer=True)
    except Exception:
        # Fallback if this JAX version rejects a 1-deep pipeline_mode.
        out2d = _mlp_pallas(x2d, w_gu, down_w, tm=tm, ti=ti,
                            vmem_limit=vmem_limit, single_buffer=False)
    return out2d.reshape(B, S, H)


def _reference(x, gate_w, up_w, down_w):
    g = jnp.einsum("bsh,hi->bsi", x, gate_w)
    u = jnp.einsum("bsh,hi->bsi", x, up_w)
    h = jax.nn.silu(g) * u
    return jnp.einsum("bsi,ih->bsh", h, down_w)


def _make_inputs(key, B, S, H, I, dtype):
    kx, kg, ku, kd = jax.random.split(key, 4)
    x = jax.random.normal(kx, (B, S, H), dtype=jnp.float32)
    gate_w = jax.random.normal(kg, (H, I), dtype=jnp.float32) * 0.05
    up_w = jax.random.normal(ku, (H, I), dtype=jnp.float32) * 0.05
    down_w = jax.random.normal(kd, (I, H), dtype=jnp.float32) * 0.05
    return (x.astype(dtype), gate_w.astype(dtype),
            up_w.astype(dtype), down_w.astype(dtype))


if __name__ == "__main__":
    key = jax.random.PRNGKey(0)
    k1, k2 = jax.random.split(key, 2)

    # --- Test 1: tiny shapes (single tile, full-dim blocks), fp32 ---
    B, S, H, I = 2, 4, 32, 64
    x, gate_w, up_w, down_w = _make_inputs(k1, B, S, H, I, jnp.float32)
    out = jax.block_until_ready(deepseek_v3_mlp(x, gate_w, up_w, down_w))
    ref = _reference(x, gate_w, up_w, down_w)
    assert out.shape == (B, S, H)
    assert jnp.allclose(out, ref, atol=1e-5, rtol=1e-5), "tiny fp32 mismatch"

    # --- Test 2: multi-tile grid (token tiles x reduction tiles), fp32 ---
    B, S, H, I = 2, 256, 128, 512
    x, gate_w, up_w, down_w = _make_inputs(k2, B, S, H, I, jnp.float32)
    out = jax.block_until_ready(
        deepseek_v3_mlp(x, gate_w, up_w, down_w, tm=256, ti=256))
    ref = _reference(x, gate_w, up_w, down_w)
    assert out.shape == (B, S, H)
    assert jnp.allclose(out, ref, atol=1e-3, rtol=1e-3), "tiled fp32 mismatch"

    # --- Test 3: bf16 operands (production dtype), auto-selected tiles ---
    xb16 = x.astype(jnp.bfloat16)
    gwb = gate_w.astype(jnp.bfloat16)
    uwb = up_w.astype(jnp.bfloat16)
    dwb = down_w.astype(jnp.bfloat16)
    outb = jax.block_until_ready(deepseek_v3_mlp(xb16, gwb, uwb, dwb))
    refb = _reference(xb16.astype(jnp.float32), gwb.astype(jnp.float32),
                      uwb.astype(jnp.float32), dwb.astype(jnp.float32))
    assert outb.dtype == jnp.bfloat16
    assert jnp.allclose(outb.astype(jnp.float32), refb,
                        atol=1e-2, rtol=5e-2), "bf16 mismatch"

    print("KERNEL_OK")
</pallas_src>

<mosaic_0001>
module attributes {stable_mosaic.version = 11 : i64} {
  func.func @_mlp_kernel(%arg0: i32, %arg1: i32, %arg2: memref<8x32xf32, #tpu.memory_space<vmem>>, %arg3: memref<32x128xf32, #tpu.memory_space<vmem>>, %arg4: memref<64x32xf32, #tpu.memory_space<vmem>>, %arg5: memref<8x32xf32, #tpu.memory_space<vmem>>, %arg6: memref<8x32xf32, #tpu.memory_space<vmem>>) attributes {dimension_semantics = [#tpu.dimension_semantics<parallel>, #tpu.dimension_semantics<arbitrary>], iteration_bounds = array<i64: 1, 1>, scalar_prefetch = 0 : i64, scratch_operands = 1 : i64, tpu.core_type = #tpu.core_type<tc>, window_params = [{pipeline_mode = #tpu.pipeline_mode<synchronous>, transform_indices = @transform_0, window_bounds = array<i64: 8, 32>}, {transform_indices = @transform_1, window_bounds = array<i64: 32, 128>}, {transform_indices = @transform_2, window_bounds = array<i64: 64, 32>}, {pipeline_mode = #tpu.pipeline_mode<synchronous>, transform_indices = @transform_3, window_bounds = array<i64: 8, 32>}]} {
    %c0_i32 = arith.constant 0 : i32
    %0 = arith.cmpi eq, %arg1, %c0_i32 : i32
    %1 = arith.extui %0 : i1 to i32
    %c0_i32_0 = arith.constant 0 : i32
    %2 = arith.cmpi ne, %1, %c0_i32_0 : i32
    scf.if %2 {
      %cst_14 = arith.constant 0.000000e+00 : f32
      %23 = vector.broadcast %cst_14 : f32 to vector<8x32xf32>
      %c0_15 = arith.constant 0 : index
      %c0_16 = arith.constant 0 : index
      %24 = vector.load %arg6[%c0_15, %c0_16] : memref<8x32xf32, #tpu.memory_space<vmem>>, vector<8x32xf32>
      tpu.vector_store %arg6[%c0_15, %c0_16], %23 {strides = array<i32>} : memref<8x32xf32, #tpu.memory_space<vmem>>, vector<8x32xf32>,
    } else {
    }
    %c0 = arith.constant 0 : index
    %c0_1 = arith.constant 0 : index
    %3 = vector.load %arg2[%c0, %c0_1] : memref<8x32xf32, #tpu.memory_space<vmem>>, vector<8x32xf32>
    %c0_2 = arith.constant 0 : index
    %c0_3 = arith.constant 0 : index
    %4 = vector.load %arg3[%c0_2, %c0_3] : memref<32x128xf32, #tpu.memory_space<vmem>>, vector<32x128xf32>
    %cst = arith.constant dense<0.000000e+00> : vector<8x128xf32>
    %5 = tpu.matmul %3, %4, %cst {dimension_numbers = #tpu.dot_dimension_numbers<[1], [0], [0], [1], [0, 0, 1, 1], [], []>} : vector<8x32xf32>, vector<32x128xf32>, vector<8x128xf32> -> vector<8x128xf32>
    %6 = vector.extract_strided_slice %5 {offsets = [0, 0], sizes = [8, 64], strides = [1, 1]} : vector<8x128xf32> to vector<8x64xf32>
    %7 = vector.extract_strided_slice %5 {offsets = [0, 64], sizes = [8, 64], strides = [1, 1]} : vector<8x128xf32> to vector<8x64xf32>
    %8 = arith.negf %6 : vector<8x64xf32>
    %9 = math.exp %8 : vector<8x64xf32>
    %cst_4 = arith.constant 1.000000e+00 : f32
    %10 = vector.broadcast %cst_4 : f32 to vector<8x64xf32>
    %11 = arith.addf %10, %9 : vector<8x64xf32>
    %12 = arith.divf %10, %11 : vector<8x64xf32>
    %13 = arith.mulf %6, %12 : vector<8x64xf32>
    %14 = arith.mulf %13, %7 : vector<8x64xf32>
    %c0_5 = arith.constant 0 : index
    %c0_6 = arith.constant 0 : index
    %15 = vector.load %arg6[%c0_5, %c0_6] : memref<8x32xf32, #tpu.memory_space<vmem>>, vector<8x32xf32>
    %c0_7 = arith.constant 0 : index
    %c0_8 = arith.constant 0 : index
    %16 = vector.load %arg4[%c0_7, %c0_8] : memref<64x32xf32, #tpu.memory_space<vmem>>, vector<64x32xf32>
    %cst_9 = arith.constant dense<0.000000e+00> : vector<8x32xf32>
    %17 = tpu.matmul %14, %16, %cst_9 {dimension_numbers = #tpu.dot_dimension_numbers<[1], [0], [0], [1], [0, 0, 1, 1], [], []>} : vector<8x64xf32>, vector<64x32xf32>, vector<8x32xf32> -> vector<8x32xf32>
    %18 = arith.addf %15, %17 : vector<8x32xf32>
    %c0_10 = arith.constant 0 : index
    %c0_11 = arith.constant 0 : index
    %19 = vector.load %arg6[%c0_10, %c0_11] : memref<8x32xf32, #tpu.memory_space<vmem>>, vector<8x32xf32>
    tpu.vector_store %arg6[%c0_10, %c0_11], %18 {strides = array<i32>} : memref<8x32xf32, #tpu.memory_space<vmem>>, vector<8x32xf32>,
    %c0_i32_12 = arith.constant 0 : i32
    %20 = arith.cmpi eq, %arg1, %c0_i32_12 : i32
    %21 = arith.extui %20 : i1 to i32
    %c0_i32_13 = arith.constant 0 : i32
    %22 = arith.cmpi ne, %21, %c0_i32_13 : i32
    scf.if %22 {
      %c0_14 = arith.constant 0 : index
      %c0_15 = arith.constant 0 : index
      %23 = vector.load %arg6[%c0_14, %c0_15] : memref<8x32xf32, #tpu.memory_space<vmem>>, vector<8x32xf32>
      %c0_16 = arith.constant 0 : index
      %c0_17 = arith.constant 0 : index
      %24 = vector.load %arg5[%c0_16, %c0_17] : memref<8x32xf32, #tpu.memory_space<vmem>>, vector<8x32xf32>
      tpu.vector_store %arg5[%c0_16, %c0_17], %23 {strides = array<i32>} : memref<8x32xf32, #tpu.memory_space<vmem>>, vector<8x32xf32>,
    } else {
    }
    return
  }
  func.func @transform_0(%arg0: i32, %arg1: i32) -> (i32, i32) {
    %c0_i32 = arith.constant 0 : i32
    %c0_i32_0 = arith.constant 0 : i32
    return %arg0, %c0_i32 : i32, i32
  }
  func.func @transform_1(%arg0: i32, %arg1: i32) -> (i32, i32) {
    %c0_i32 = arith.constant 0 : i32
    %c0_i32_0 = arith.constant 0 : i32
    return %c0_i32, %arg1 : i32, i32
  }
  func.func @transform_2(%arg0: i32, %arg1: i32) -> (i32, i32) {
    %c0_i32 = arith.constant 0 : i32
    %c0_i32_0 = arith.constant 0 : i32
    return %arg1, %c0_i32 : i32, i32
  }
  func.func @transform_3(%arg0: i32, %arg1: i32) -> (i32, i32) {
    %c0_i32 = arith.constant 0 : i32
    %c0_i32_0 = arith.constant 0 : i32
    return %arg0, %c0_i32 : i32, i32
  }
}

module attributes {stable_mosaic.version = 11 : i64} {
  func.func @_mlp_kernel(%arg0: i32, %arg1: i32, %arg2: memref<8x32xf32, #tpu.memory_space<vmem>>, %arg3: memref<32x128xf32, #tpu.memory_space<vmem>>, %arg4: memref<64x32xf32, #tpu.memory_space<vmem>>, %arg5: memref<8x32xf32, #tpu.memory_space<vmem>>, %arg6: memref<8x32xf32, #tpu.memory_space<vmem>>) attributes {dimension_semantics = [#tpu.dimension_semantics<parallel>, #tpu.dimension_semantics<arbitrary>], iteration_bounds = array<i64: 1, 1>, scalar_prefetch = 0 : i64, scratch_operands = 1 : i64, tpu.core_type = #tpu.core_type<tc>, window_params = [{transform_indices = @transform_0, window_bounds = array<i64: 8, 32>}, {transform_indices = @transform_1, window_bounds = array<i64: 32, 128>}, {transform_indices = @transform_2, window_bounds = array<i64: 64, 32>}, {transform_indices = @transform_3, window_bounds = array<i64: 8, 32>}]} {
    %c0_i32 = arith.constant 0 : i32
    %0 = arith.cmpi eq, %arg1, %c0_i32 : i32
    %1 = arith.extui %0 : i1 to i32
    %c0_i32_0 = arith.constant 0 : i32
    %2 = arith.cmpi ne, %1, %c0_i32_0 : i32
    scf.if %2 {
      %cst_14 = arith.constant 0.000000e+00 : f32
      %23 = vector.broadcast %cst_14 : f32 to vector<8x32xf32>
      %c0_15 = arith.constant 0 : index
      %c0_16 = arith.constant 0 : index
      %24 = vector.load %arg6[%c0_15, %c0_16] : memref<8x32xf32, #tpu.memory_space<vmem>>, vector<8x32xf32>
      tpu.vector_store %arg6[%c0_15, %c0_16], %23 {strides = array<i32>} : memref<8x32xf32, #tpu.memory_space<vmem>>, vector<8x32xf32>,
    } else {
    }
    %c0 = arith.constant 0 : index
    %c0_1 = arith.constant 0 : index
    %3 = vector.load %arg2[%c0, %c0_1] : memref<8x32xf32, #tpu.memory_space<vmem>>, vector<8x32xf32>
    %c0_2 = arith.constant 0 : index
    %c0_3 = arith.constant 0 : index
    %4 = vector.load %arg3[%c0_2, %c0_3] : memref<32x128xf32, #tpu.memory_space<vmem>>, vector<32x128xf32>
    %cst = arith.constant dense<0.000000e+00> : vector<8x128xf32>
    %5 = tpu.matmul %3, %4, %cst {dimension_numbers = #tpu.dot_dimension_numbers<[1], [0], [0], [1], [0, 0, 1, 1], [], []>} : vector<8x32xf32>, vector<32x128xf32>, vector<8x128xf32> -> vector<8x128xf32>
    %6 = vector.extract_strided_slice %5 {offsets = [0, 0], sizes = [8, 64], strides = [1, 1]} : vector<8x128xf32> to vector<8x64xf32>
    %7 = vector.extract_strided_slice %5 {offsets = [0, 64], sizes = [8, 64], strides = [1, 1]} : vector<8x128xf32> to vector<8x64xf32>
    %8 = arith.negf %6 : vector<8x64xf32>
    %9 = math.exp %8 : vector<8x64xf32>
    %cst_4 = arith.constant 1.000000e+00 : f32
    %10 = vector.broadcast %cst_4 : f32 to vector<8x64xf32>
    %11 = arith.addf %10, %9 : vector<8x64xf32>
    %12 = arith.divf %10, %11 : vector<8x64xf32>
    %13 = arith.mulf %6, %12 : vector<8x64xf32>
    %14 = arith.mulf %13, %7 : vector<8x64xf32>
    %c0_5 = arith.constant 0 : index
    %c0_6 = arith.constant 0 : index
    %15 = vector.load %arg6[%c0_5, %c0_6] : memref<8x32xf32, #tpu.memory_space<vmem>>, vector<8x32xf32>
    %c0_7 = arith.constant 0 : index
    %c0_8 = arith.constant 0 : index
    %16 = vector.load %arg4[%c0_7, %c0_8] : memref<64x32xf32, #tpu.memory_space<vmem>>, vector<64x32xf32>
    %cst_9 = arith.constant dense<0.000000e+00> : vector<8x32xf32>
    %17 = tpu.matmul %14, %16, %cst_9 {dimension_numbers = #tpu.dot_dimension_numbers<[1], [0], [0], [1], [0, 0, 1, 1], [], []>} : vector<8x64xf32>, vector<64x32xf32>, vector<8x32xf32> -> vector<8x32xf32>
    %18 = arith.addf %15, %17 : vector<8x32xf32>
    %c0_10 = arith.constant 0 : index
    %c0_11 = arith.constant 0 : index
    %19 = vector.load %arg6[%c0_10, %c0_11] : memref<8x32xf32, #tpu.memory_space<vmem>>, vector<8x32xf32>
    tpu.vector_store %arg6[%c0_10, %c0_11], %18 {strides = array<i32>} : memref<8x32xf32, #tpu.memory_space<vmem>>, vector<8x32xf32>,
    %c0_i32_12 = arith.constant 0 : i32
    %20 = arith.cmpi eq, %arg1, %c0_i32_12 : i32
    %21 = arith.extui %20 : i1 to i32
    %c0_i32_13 = arith.constant 0 : i32
    %22 = arith.cmpi ne, %21, %c0_i32_13 : i32
    scf.if %22 {
      %c0_14 = arith.constant 0 : index
      %c0_15 = arith.constant 0 : index
      %23 = vector.load %arg6[%c0_14, %c0_15] : memref<8x32xf32, #tpu.memory_space<vmem>>, vector<8x32xf32>
      %c0_16 = arith.constant 0 : index
      %c0_17 = arith.constant 0 : index
      %24 = vector.load %arg5[%c0_16, %c0_17] : memref<8x32xf32, #tpu.memory_space<vmem>>, vector<8x32xf32>
      tpu.vector_store %arg5[%c0_16, %c0_17], %23 {strides = array<i32>} : memref<8x32xf32, #tpu.memory_space<vmem>>, vector<8x32xf32>,
    } else {
    }
    return
  }
  func.func @transform_0(%arg0: i32, %arg1: i32) -> (i32, i32) {
    %c0_i32 = arith.constant 0 : i32
    %c0_i32_0 = arith.constant 0 : i32
    return %arg0, %c0_i32 : i32, i32
  }
  func.func @transform_1(%arg0: i32, %arg1: i32) -> (i32, i32) {
    %c0_i32 = arith.constant 0 : i32
    %c0_i32_0 = arith.constant 0 : i32
    return %c0_i32, %arg1 : i32, i32
  }
  func.func @transform_2(%arg0: i32, %arg1: i32) -> (i32, i32) {
    %c0_i32 = arith.constant 0 : i32
    %c0_i32_0 = arith.constant 0 : i32
    return %arg1, %c0_i32 : i32, i32
  }
  func.func @transform_3(%arg0: i32, %arg1: i32) -> (i32, i32) {
    %c0_i32 = arith.constant 0 : i32
    %c0_i32_0 = arith.constant 0 : i32
    return %arg0, %c0_i32 : i32, i32
  }
}

</mosaic_0001>

<llo_original>
// kernel: _mlp_pallas.1
$region0: #{_mlp_pallas.1}
  #allocation0 [shape = 'u32[]', space=smem, size = 0x4, offset = 0x4, fixed_abs, tag = 'smem constant byte address 0x4 - core index']
  #allocation1 [shape = 'u32[72,128]{1,0:T(1,128)}', space=vmem, size = 0x9000, scoped, tag = 'internal scratch']
  #allocation2 [shape = 'f32[8,32]{1,0:T(8,128)}', space=vmem, size = 0x1000, scoped, tag = 'scratch operand']
  %s0 = inlined_call_operand.vmem [shape: f32[8,32], index: 0, kind: input, shape index: {}]
  %s1 = inlined_call_operand.vmem [shape: f32[32,128], index: 1, kind: input, shape index: {}]
  %s2 = inlined_call_operand.vmem [shape: f32[64,32], index: 2, kind: input, shape index: {}]
  %s3 = inlined_call_operand.hbm [shape: f32[8,32], index: 3, kind: output, shape index: {}]
  %s4 = sld [smem:[#allocation0]]
  $region30: #{_mlp_pallas.1} parent=0
    _
  %s6 = ssub.s32 1, %s4
  %s7 = scalar_select 0, %s6, %s4
  $region1: #{_mlp_pallas.1} parent=0
    #allocation3 [shape = 'u8[4096]{0}', space=vmem, size = 0x1000, scoped, tag = 'output window, operand 0, single buffered']
    #allocation4 [shape = 's32[1]{0}', space=sflag, size = 0x4, scoped, tag = 'scoped memory for _mlp_pallas.1']
    %8 = vsyncpa [#allocation4], 0
    // Predicated region
    $region2: #{_mlp_pallas.1} parent=1 // pred_check
      _
    $region3: #{_mlp_pallas.1} parent=1 // pred_check_branch
      %10 = sbr.rel (0) target = $region5
    $region4: #{_mlp_pallas.1} parent=1 // pred_region
      _
    $region5: #{_mlp_pallas.1} parent=1 // pred_fallthru
      _
    // Predicated region
    $region6: #{_mlp_pallas.1} parent=1 // pred_check
      _
    $region7: #{_mlp_pallas.1} parent=1 // pred_check_branch
      %12 = sbr.rel (0) target = $region9
    $region8: #{_mlp_pallas.1} parent=1 // pred_region
      _
    $region9: #{_mlp_pallas.1} parent=1 // pred_fallthru
      _
    // Predicated region
    $region10: #{_mlp_pallas.1} parent=1 // pred_check
      _
    $region11: #{_mlp_pallas.1} parent=1 // pred_check_branch
      %14 = sbr.rel (0) target = $region13
    $region12: #{_mlp_pallas.1} parent=1 // pred_region
      _
    $region13: #{_mlp_pallas.1} parent=1 // pred_fallthru
      _
    %p15 = scmp.eq.s32.totalorder 0, 0
    // Predicated region
    $region14: #{_mlp_pallas.1} parent=1 // pred_check
      %p16 = pneg %p15
    $region15: #{_mlp_pallas.1} parent=1 // pred_check_branch
      %18 = sbr.rel (%p16) target = $region17
    $region16: #{_mlp_pallas.1} parent=1 // pred_region
      %vm19 = vcmask 261120
      %20 = vst.msk [vmem:[#allocation2] sm:$0xff] %vm19, 0.0
    $region17: #{_mlp_pallas.1} parent=1 // pred_fallthru
      _
    %v21 = vld [vmem:[%s0] sm:$0xff]
    %v22 = vld [vmem:[%s1] sm:$0xff]
    %v23 = vld [vmem:[%s1 + $0x8] sm:$0xff]
    %v24 = vld [vmem:[%s1 + $0x10] sm:$0xff]
    %v25 = vld [vmem:[%s1 + $0x18] sm:$0xff]
    %vm26 = vcmask 261120
    %v28 = vsel %vm26, %v21, 0
    %30 = vmatpush.msra.mxu0 0.0
    %31 = vmatpush.msra.mxu0 0.0
    %32 = vmatpush.msra.mxu0 0.0
    %33 = vmatpush.msra.mxu0 0.0
    %34 = vmatpush.msra.mxu0 0.0
    %35 = vmatpush.msra.mxu0 0.0
    %36 = vmatpush.msra.mxu0 0.0
    %37 = vmatpush.msra.mxu0 0.0
    %38 = vmatpush.msra.mxu0 0.0
    %39 = vmatpush.msra.mxu0 0.0
    %40 = vmatpush.msra.mxu0 0.0
    %41 = vmatpush.msra.mxu0 0.0
    %42 = vmatpush.msra.mxu0 %v25
    %43 = vmatpush.msra.mxu0 %v24
    %44 = vmatpush.msra.mxu0 %v23
    %45 = vmatpush.msra.mxu0 %v22
    %46 = vmatmul.f32.gmra.mxu0 %v28
    %v47 = vpop.f32.mrf.mxu0
    %v48 = vadd.f32 0.0, %v47
    %49 = vdwg.mxu0
    %v50 = vxor.u32 %v48, 2147483648
    %v51 = vmul.f32 %v50, 1.442695
    %v52 = vpow.pop %v51
    %v53 = vadd.f32 %v52, 1.0
    %v54 = vrcp.pop %v53
    %v55 = vmul.f32 %v53, %v54
    %v56 = vsub.f32 1.0, %v55
    %v57 = vmul.f32 %v54, %v56
    %v58 = vadd.f32 %v54, %v57
    %vm59 = vweird.f32 %v53
    %vm60 = vweird.f32 %v54
    %vm61 = vmor %vm59, %vm60
    %v62 = vsel %vm61, %v54, %v58
    %v63 = vand.u32 2147483647, %v53
    %vm64 = vcmp.eq.f32.partialorder %v63, 8.507059e+37
    %v65 = vand.u32 %v53, 2147483648
    %v66 = vor.u32 1.1754944e-38, %v65
    %v67 = vsel %vm64, %v66, %v62
    %v68 = vmul.f32 1.0, %v67
    %v69 = vmul.f32 %v48, %v68
    %71 = vrot.lane.b32.xlu0 %v48, 64
    %v72 = vpop.permute.xlu0 %71
    %v74 = vmul.f32 %v69, %v72
    %v75 = vld [vmem:[#allocation2] sm:$0xff]
    %v76 = vld [vmem:[%s2] sm:$0xff]
    %v77 = vld [vmem:[%s2 + $0x8] sm:$0xff]
    %v78 = vld [vmem:[%s2 + $0x10] sm:$0xff]
    %v79 = vld [vmem:[%s2 + $0x18] sm:$0xff]
    %v80 = vld [vmem:[%s2 + $0x20] sm:$0xff]
    %v81 = vld [vmem:[%s2 + $0x28] sm:$0xff]
    %v82 = vld [vmem:[%s2 + $0x30] sm:$0xff]
    %v83 = vld [vmem:[%s2 + $0x38] sm:$0xff]
    %vm84 = vcmask 523264
    %v86 = vsel %vm84, %v74, 0
    %88 = vmatpush.msra.mxu0 0.0
    %89 = vmatpush.msra.mxu0 0.0
    %90 = vmatpush.msra.mxu0 0.0
    %91 = vmatpush.msra.mxu0 0.0
    %92 = vmatpush.msra.mxu0 0.0
    %93 = vmatpush.msra.mxu0 0.0
    %94 = vmatpush.msra.mxu0 0.0
    %95 = vmatpush.msra.mxu0 0.0
    %96 = vmatpush.msra.mxu0 %v83
    %97 = vmatpush.msra.mxu0 %v82
    %98 = vmatpush.msra.mxu0 %v81
    %99 = vmatpush.msra.mxu0 %v80
    %100 = vmatpush.msra.mxu0 %v79
    %101 = vmatpush.msra.mxu0 %v78
    %102 = vmatpush.msra.mxu0 %v77
    %103 = vmatpush.msra.mxu0 %v76
    %104 = vmatmul.f32.gmra.mxu0 %v86
    %v105 = vpop.f32.mrf.mxu0
    %v106 = vadd.f32 0.0, %v105
    %107 = vdwg.mxu0
    %v108 = vadd.f32 %v75, %v106
    %109 = vst.msk [vmem:[#allocation2] sm:$0xff] %vm26, %v108
    // Predicated region
    $region18: #{_mlp_pallas.1} parent=1 // pred_check
      %p110 = pneg %p15
    $region19: #{_mlp_pallas.1} parent=1 // pred_check_branch
      %112 = sbr.rel (%p110) target = $region21
    $region20: #{_mlp_pallas.1} parent=1 // pred_region
      %v113 = vld [vmem:[#allocation2] sm:$0xff]
      %114 = vst.msk [vmem:[#allocation3] sm:$0xff] %vm26, %v113
    $region21: #{_mlp_pallas.1} parent=1 // pred_fallthru
      _
    // Predicated region
    $region22: #{_mlp_pallas.1} parent=1 // pred_check
      _
    $region23: #{_mlp_pallas.1} parent=1 // pred_check_branch
      %116 = sbr.rel (0) target = $region25
    $region24: #{_mlp_pallas.1} parent=1 // pred_region
      %118 = vsyncadd [#allocation4], 0
      %s120 = sshll.u32 [#allocation3], 4
      %s121 = int_to_ptr.vmem [resolvable:$true] %s120
      %s122 = sshll.u32 %s3, 4
      %s123 = int_to_ptr.hbm [resolvable:$true] %s122
      %125 = dma.vmem_to_hbm [thread:$0]  %s121, 128, %s123, [#allocation4]
    $region25: #{_mlp_pallas.1} parent=1 // pred_fallthru
      _
    // Predicated region
    $region26: #{_mlp_pallas.1} parent=1 // pred_check
      _
    $region27: #{_mlp_pallas.1} parent=1 // pred_check_branch
      %127 = sbr.rel (0) target = $region29
    $region28: #{_mlp_pallas.1} parent=1 // pred_region
      %129 = dma.done [#allocation4], 128
    $region29: #{_mlp_pallas.1} parent=1 // pred_fallthru
      _
    %130 = vsyncpa [#allocation4], 1

// kernel: _mlp_pallas.1
$region0: #{_mlp_pallas.1}
  #allocation0 [shape = 'u32[]', space=smem, size = 0x4, offset = 0x4, fixed_abs, tag = 'smem constant byte address 0x4 - core index']
  #allocation1 [shape = 'u32[72,128]{1,0:T(1,128)}', space=vmem, size = 0x9000, scoped, tag = 'internal scratch']
  #allocation2 [shape = 'f32[8,32]{1,0:T(8,128)}', space=vmem, size = 0x1000, scoped, tag = 'scratch operand']
  %s0 = inlined_call_operand.vmem [shape: f32[8,32], index: 0, kind: input, shape index: {}]
  %s1 = inlined_call_operand.vmem [shape: f32[32,128], index: 1, kind: input, shape index: {}]
  %s2 = inlined_call_operand.vmem [shape: f32[64,32], index: 2, kind: input, shape index: {}]
  %s3 = inlined_call_operand.hbm [shape: f32[8,32], index: 3, kind: output, shape index: {}]
  %s4 = sld [smem:[#allocation0]]
  $region30: #{_mlp_pallas.1} parent=0
    _
  %s6 = ssub.s32 1, %s4
  %s7 = scalar_select 0, %s6, %s4
  $region1: #{_mlp_pallas.1} parent=0
    #allocation3 [shape = 'u8[4096]{0}', space=vmem, size = 0x1000, scoped, tag = 'output window, operand 0, single buffered']
    #allocation4 [shape = 's32[1]{0}', space=sflag, size = 0x4, scoped, tag = 'scoped memory for _mlp_pallas.1']
    %8 = vsyncpa [#allocation4], 0
    // Predicated region
    $region2: #{_mlp_pallas.1} parent=1 // pred_check
      _
    $region3: #{_mlp_pallas.1} parent=1 // pred_check_branch
      %10 = sbr.rel (0) target = $region5
    $region4: #{_mlp_pallas.1} parent=1 // pred_region
      _
    $region5: #{_mlp_pallas.1} parent=1 // pred_fallthru
      _
    // Predicated region
    $region6: #{_mlp_pallas.1} parent=1 // pred_check
      _
    $region7: #{_mlp_pallas.1} parent=1 // pred_check_branch
      %12 = sbr.rel (0) target = $region9
    $region8: #{_mlp_pallas.1} parent=1 // pred_region
      _
    $region9: #{_mlp_pallas.1} parent=1 // pred_fallthru
      _
    // Predicated region
    $region10: #{_mlp_pallas.1} parent=1 // pred_check
      _
    $region11: #{_mlp_pallas.1} parent=1 // pred_check_branch
      %14 = sbr.rel (0) target = $region13
    $region12: #{_mlp_pallas.1} parent=1 // pred_region
      _
    $region13: #{_mlp_pallas.1} parent=1 // pred_fallthru
      _
    %p15 = scmp.eq.s32.totalorder 0, 0
    // Predicated region
    $region14: #{_mlp_pallas.1} parent=1 // pred_check
      %p16 = pneg %p15
    $region15: #{_mlp_pallas.1} parent=1 // pred_check_branch
      %18 = sbr.rel (%p16) target = $region17
    $region16: #{_mlp_pallas.1} parent=1 // pred_region
      %vm19 = vcmask 261120
      %20 = vst.msk [vmem:[#allocation2] sm:$0xff] %vm19, 0.0
    $region17: #{_mlp_pallas.1} parent=1 // pred_fallthru
      _
    %v21 = vld [vmem:[%s0] sm:$0xff]
    %v22 = vld [vmem:[%s1] sm:$0xff]
    %v23 = vld [vmem:[%s1 + $0x8] sm:$0xff]
    %v24 = vld [vmem:[%s1 + $0x10] sm:$0xff]
    %v25 = vld [vmem:[%s1 + $0x18] sm:$0xff]
    %vm26 = vcmask 261120
    %v28 = vsel %vm26, %v21, 0
    %30 = vmatpush.msra.mxu0 0.0
    %31 = vmatpush.msra.mxu0 0.0
    %32 = vmatpush.msra.mxu0 0.0
    %33 = vmatpush.msra.mxu0 0.0
    %34 = vmatpush.msra.mxu0 0.0
    %35 = vmatpush.msra.mxu0 0.0
    %36 = vmatpush.msra.mxu0 0.0
    %37 = vmatpush.msra.mxu0 0.0
    %38 = vmatpush.msra.mxu0 0.0
    %39 = vmatpush.msra.mxu0 0.0
    %40 = vmatpush.msra.mxu0 0.0
    %41 = vmatpush.msra.mxu0 0.0
    %42 = vmatpush.msra.mxu0 %v25
    %43 = vmatpush.msra.mxu0 %v24
    %44 = vmatpush.msra.mxu0 %v23
    %45 = vmatpush.msra.mxu0 %v22
    %46 = vmatmul.f32.gmra.mxu0 %v28
    %v47 = vpop.f32.mrf.mxu0
    %v48 = vadd.f32 0.0, %v47
    %49 = vdwg.mxu0
    %v50 = vxor.u32 %v48, 2147483648
    %v51 = vmul.f32 %v50, 1.442695
    %v52 = vpow.pop %v51
    %v53 = vadd.f32 %v52, 1.0
    %v54 = vrcp.pop %v53
    %v55 = vmul.f32 %v53, %v54
    %v56 = vsub.f32 1.0, %v55
    %v57 = vmul.f32 %v54, %v56
    %v58 = vadd.f32 %v54, %v57
    %vm59 = vweird.f32 %v53
    %vm60 = vweird.f32 %v54
    %vm61 = vmor %vm59, %vm60
    %v62 = vsel %vm61, %v54, %v58
    %v63 = vand.u32 2147483647, %v53
    %vm64 = vcmp.eq.f32.partialorder %v63, 8.507059e+37
    %v65 = vand.u32 %v53, 2147483648
    %v66 = vor.u32 1.1754944e-38, %v65
    %v67 = vsel %vm64, %v66, %v62
    %v68 = vmul.f32 1.0, %v67
    %v69 = vmul.f32 %v48, %v68
    %71 = vrot.lane.b32.xlu0 %v48, 64
    %v72 = vpop.permute.xlu0 %71
    %v74 = vmul.f32 %v69, %v72
    %v75 = vld [vmem:[#allocation2] sm:$0xff]
    %v76 = vld [vmem:[%s2] sm:$0xff]
    %v77 = vld [vmem:[%s2 + $0x8] sm:$0xff]
    %v78 = vld [vmem:[%s2 + $0x10] sm:$0xff]
    %v79 = vld [vmem:[%s2 + $0x18] sm:$0xff]
    %v80 = vld [vmem:[%s2 + $0x20] sm:$0xff]
    %v81 = vld [vmem:[%s2 + $0x28] sm:$0xff]
    %v82 = vld [vmem:[%s2 + $0x30] sm:$0xff]
    %v83 = vld [vmem:[%s2 + $0x38] sm:$0xff]
    %vm84 = vcmask 523264
    %v86 = vsel %vm84, %v74, 0
    %88 = vmatpush.msra.mxu0 0.0
    %89 = vmatpush.msra.mxu0 0.0
    %90 = vmatpush.msra.mxu0 0.0
    %91 = vmatpush.msra.mxu0 0.0
    %92 = vmatpush.msra.mxu0 0.0
    %93 = vmatpush.msra.mxu0 0.0
    %94 = vmatpush.msra.mxu0 0.0
    %95 = vmatpush.msra.mxu0 0.0
    %96 = vmatpush.msra.mxu0 %v83
    %97 = vmatpush.msra.mxu0 %v82
    %98 = vmatpush.msra.mxu0 %v81
    %99 = vmatpush.msra.mxu0 %v80
    %100 = vmatpush.msra.mxu0 %v79
    %101 = vmatpush.msra.mxu0 %v78
    %102 = vmatpush.msra.mxu0 %v77
    %103 = vmatpush.msra.mxu0 %v76
    %104 = vmatmul.f32.gmra.mxu0 %v86
    %v105 = vpop.f32.mrf.mxu0
    %v106 = vadd.f32 0.0, %v105
    %107 = vdwg.mxu0
    %v108 = vadd.f32 %v75, %v106
    %109 = vst.msk [vmem:[#allocation2] sm:$0xff] %vm26, %v108
    // Predicated region
    $region18: #{_mlp_pallas.1} parent=1 // pred_check
      %p110 = pneg %p15
    $region19: #{_mlp_pallas.1} parent=1 // pred_check_branch
      %112 = sbr.rel (%p110) target = $region21
    $region20: #{_mlp_pallas.1} parent=1 // pred_region
      %v113 = vld [vmem:[#allocation2] sm:$0xff]
      %114 = vst.msk [vmem:[#allocation3] sm:$0xff] %vm26, %v113
    $region21: #{_mlp_pallas.1} parent=1 // pred_fallthru
      _
    // Predicated region
    $region22: #{_mlp_pallas.1} parent=1 // pred_check
      _
    $region23: #{_mlp_pallas.1} parent=1 // pred_check_branch
      %116 = sbr.rel (0) target = $region25
    $region24: #{_mlp_pallas.1} parent=1 // pred_region
      %118 = vsyncadd [#allocation4], 0
      %s120 = sshll.u32 [#allocation3], 4
      %s121 = int_to_ptr.vmem [resolvable:$true] %s120
      %s122 = sshll.u32 %s3, 4
      %s123 = int_to_ptr.hbm [resolvable:$true] %s122
      %125 = dma.vmem_to_hbm [thread:$0]  %s121, 128, %s123, [#allocation4]
    $region25: #{_mlp_pallas.1} parent=1 // pred_fallthru
      _
    // Predicated region
    $region26: #{_mlp_pallas.1} parent=1 // pred_check
      _
    $region27: #{_mlp_pallas.1} parent=1 // pred_check_branch
      %127 = sbr.rel (0) target = $region29
    $region28: #{_mlp_pallas.1} parent=1 // pred_region
      %129 = dma.done [#allocation4], 128
    $region29: #{_mlp_pallas.1} parent=1 // pred_fallthru
      _
    %130 = vsyncpa [#allocation4], 1

</llo_original>
